<compile_context>
chip_gen: v5e
topology: v5e:2x2
jax: 0.10.0
libtpu: 0.0.40
codegen_flags: <defaults>
</compile_context>

<pallas_src>
import jax
import jax.numpy as jnp
from jax import lax
from jax.experimental import pallas as pl
from jax.experimental.pallas import tpu as pltpu


# (dh, parity) -> conv tap index along that spatial axis (None => zero block)
_TAP = {(0, 0): None, (0, 1): 0, (1, 0): 1, (1, 1): 2}


def _phase_weight(weight, C):
    """(Cout, Cin, 3, 3) PyTorch Conv2d weight -> (2, 2, 4*Cin, Cout) fused taps."""
    rows_dh = []
    for dh in range(2):
        rows_dw = []
        for dw in range(2):
            blocks = []
            for pi in range(2):
                for pj in range(2):
                    kh = _TAP[(dh, pi)]
                    kw = _TAP[(dw, pj)]
                    if kh is None or kw is None:
                        blocks.append(jnp.zeros((C, C), weight.dtype))
                    else:
                        blocks.append(weight[:, :, kh, kw].T)   # (Cin, Cout)
            rows_dw.append(jnp.concatenate(blocks, axis=0))     # (4C, C)
        rows_dh.append(jnp.stack(rows_dw, axis=0))              # (2, 4C, C)
    return jnp.stack(rows_dh, axis=0)                           # (2, 2, 4C, C)


def _downsample_kernel(x_ref, xh_ref, w_ref, b_ref, o_ref):
    # x_ref : (1, TH, Wh, 4C)  unpadded phase rows [i*TH, (i+1)*TH)
    # xh_ref: (1, 1,  Wh, 4C)  phase row i*TH - 1 (index clamped; zeroed when i==0)
    # w_ref : (2, 2, 4C, C)    fused per-(dh,dw) tap matrices
    # b_ref : (1, C)           bias (f32)
    # o_ref : (1, TH, Wh, C)   output tile (NHWC)
    TH = x_ref.shape[1]
    Wh = x_ref.shape[2]
    C4 = x_ref.shape[3]
    C = w_ref.shape[3]
    P = TH * Wh
    f32 = jnp.float32

    i = pl.program_id(1)

    # Flatten pixels -> matmul rows.  Leading-dim collapse: free when Wh % 8 == 0.
    x2 = x_ref[0].reshape(P, C4)

    # Four fused matmuls, contraction 4C, on the UNSHIFTED tile.  Spatial shifts
    # commute with the channel contraction, so they are applied to the C-wide
    # f32 results below (no misaligned input slices, 4x less data to shift).
    a11 = jnp.dot(x2, w_ref[1, 1], preferred_element_type=f32)   # no shift
    a10 = jnp.dot(x2, w_ref[1, 0], preferred_element_type=f32)   # needs W-shift
    a01 = jnp.dot(x2, w_ref[0, 1], preferred_element_type=f32)   # needs H-shift
    a00 = jnp.dot(x2, w_ref[0, 0], preferred_element_type=f32)   # needs H+W-shift

    # Left zero column: shifting one pixel along W == shifting one row in the
    # flattened (P, C) layout, then zeroing output columns ow == 0.
    ow_idx = lax.broadcasted_iota(jnp.int32, (TH, Wh, C), 1).reshape(P, C)
    not_left_edge = ow_idx > 0

    def shift_w(t):                                              # (P, C) -> (P, C)
        t = jnp.concatenate([jnp.zeros((1, C), f32), t[:-1]], axis=0)
        return jnp.where(not_left_edge, t, 0.0)

    # Top halo row (phase row i*TH - 1): two tiny Wh-row matmuls; masked to zero
    # for the first row-tile (global conv padding row).
    halo = xh_ref[0, 0]                                          # (Wh, 4C)
    h01 = jnp.dot(halo, w_ref[0, 1], preferred_element_type=f32)
    h00 = jnp.dot(halo, w_ref[0, 0], preferred_element_type=f32)
    h00 = jnp.concatenate([jnp.zeros((1, C), f32), h00[:-1]], axis=0)  # W-shift (1 row)
    halo_rows = (h01 + h00) * (i > 0).astype(f32)                # (Wh, C)

    # dh = 0 contribution, shifted down one output row (= Wh flattened rows),
    # with the halo row supplying local output row 0.
    e = a01 + shift_w(a00)
    e = jnp.concatenate([halo_rows, e[:-Wh]], axis=0)

    acc = a11 + shift_w(a10) + e + b_ref[...].astype(f32)        # bias hoisted once
    o_ref[0] = acc.reshape(TH, Wh, C).astype(o_ref.dtype)


def _round_up(v, m):
    return ((v + m - 1) // m) * m


def _block_bytes(lead, sub, lane, itemsize):
    """(8,128)-padded VMEM footprint of a block whose last two dims are (sub, lane)."""
    subl_tile = 8 * max(1, 4 // itemsize)          # f32: 8, bf16: 16, int8: 32
    return lead * _round_up(sub, subl_tile) * _round_up(lane, 128) * itemsize


def _vmem_budget():
    """Per-generation VMEM budget (v7x has 64 MiB, v5e/v6e have 128 MiB)."""
    try:
        cap = int(pltpu.get_tpu_info().vmem_capacity_bytes)
    except Exception:
        cap = 64 << 20                              # assume smallest (v7x-class)
    tile_budget = min(int(cap * 0.55), 56 << 20)    # working set for the picker
    vmem_limit = min(int(cap * 0.80), 100 << 20)    # scoped limit for Mosaic
    return tile_budget, vmem_limit


def _pick_tile_h(h_out, w_out, c, in_itemsize, out_itemsize, batch, budget_bytes):
    """Largest divisor of h_out whose REAL per-step VMEM residency fits the budget.

    Counts: 2x double-buffered main input + halo, 2x output, the resident fused
    weight, the live f32 intermediates (~6 output-tile-sized values) and one
    possible input-tile relayout copy.  Prefers tiles that make batch * n_h even
    so the v7x megacore can split the parallel grid across both TensorCores.
    """
    def footprint(th):
        xin = _block_bytes(th, w_out, 4 * c, in_itemsize) * 2
        halo = _block_bytes(1, w_out, 4 * c, in_itemsize) * 2
        wgt = _block_bytes(4, 4 * c, c, in_itemsize) * 2
        bias = _block_bytes(1, 1, c, 4) * 2
        outb = _block_bytes(th, w_out, c, out_itemsize) * 2
        tmps = 6 * _block_bytes(th, w_out, c, 4)            # live f32 intermediates
        tmps += _block_bytes(th, w_out, 4 * c, in_itemsize)  # possible x2 relayout copy
        return xin + halo + wgt + bias + outb + tmps

    divs = [d for d in range(1, h_out + 1) if h_out % d == 0]
    fits = [d for d in divs if footprint(d) <= budget_bytes]
    if not fits:
        # Best effort: rows span full W, so TH=1 is the smallest block we can make.
        # TODO(synk): add W tiling (with a W halo) for extreme Wh*C configurations.
        return 1
    even = [d for d in fits if (batch * (h_out // d)) % 2 == 0]
    return max(even) if even else max(fits)


def downsample_forward(x_nchw, weight, bias, t=None, *, tile_h=None,
                       compute_dtype=jnp.float32):
    """Forward of Downsample: Conv2d(n_dim, n_dim, (3,3), (2,2), (1,1)).

    x_nchw: (B, C, H, W).  weight: (Cout, Cin, 3, 3) PyTorch layout.  bias: (C,).
    `t` is ignored (as in the PyTorch module).  Returns (B, C, H//2, W//2) NCHW.
    compute_dtype=jnp.bfloat16 feeds bf16 to the MXU (f32 accumulation; all
    element-wise work stays f32, which is also what v5e's VPU wants).
    """
    del t
    B, C, H, W = x_nchw.shape
    assert H % 2 == 0 and W % 2 == 0, "stride-2 downsample expects even H, W"
    Hh, Wh = H // 2, W // 2
    out_dtype = x_nchw.dtype

    # Cast FIRST so the single space-to-depth HBM pass moves compute_dtype bytes.
    xs = x_nchw.astype(compute_dtype)
    xs = xs.reshape(B, C, Hh, 2, Wh, 2)
    xs = xs.transpose(0, 2, 4, 3, 5, 1).reshape(B, Hh, Wh, 4 * C)
    # NOTE: no jnp.pad — halos are synthesized in-kernel.

    wmat = _phase_weight(weight, C).astype(compute_dtype)         # (2, 2, 4C, C)
    bias2 = bias.reshape(1, C).astype(jnp.float32)

    budget, vmem_limit = _vmem_budget()
    if tile_h is None:
        tile_h = _pick_tile_h(Hh, Wh, C, jnp.dtype(compute_dtype).itemsize,
                              jnp.dtype(out_dtype).itemsize, B, budget)
    assert Hh % tile_h == 0, "tile_h must divide H//2"
    n_h = Hh // tile_h

    out = pl.pallas_call(
        _downsample_kernel,
        out_shape=jax.ShapeDtypeStruct((B, Hh, Wh, C), out_dtype),
        grid_spec=pltpu.PrefetchScalarGridSpec(
            num_scalar_prefetch=0,
            grid=(B, n_h),
            in_specs=[
                # main tile: TH phase-rows starting at i*TH
                pl.BlockSpec((1, tile_h, Wh, 4 * C), lambda b, i: (b, i, 0, 0)),
                # halo: phase row i*TH - 1, clamped at 0 (content masked for i==0)
                pl.BlockSpec((1, 1, Wh, 4 * C),
                             lambda b, i: (b, jnp.maximum(i * tile_h - 1, 0), 0, 0)),
                # weights / bias: constant index map => resident across the grid
                pl.BlockSpec((2, 2, 4 * C, C), lambda b, i: (0, 0, 0, 0)),
                pl.BlockSpec((1, C), lambda b, i: (0, 0)),
            ],
            out_specs=pl.BlockSpec((1, tile_h, Wh, C), lambda b, i: (b, i, 0, 0)),
        ),
        compiler_params=pltpu.CompilerParams(
            dimension_semantics=("parallel", "parallel"),
            vmem_limit_bytes=vmem_limit,
        ),
    )(xs, xs, wmat, bias2)

    # NHWC -> NCHW kept only for PyTorch API parity (output is 4x smaller than input).
    # TODO(synk): drop this transpose (and the space-to-depth pass) by DMA-ing the
    # four phases straight from the NCHW input and emitting NCHW, once the
    # stride-2-innermost DMA cost is validated for the target shapes.
    return jnp.transpose(out, (0, 3, 1, 2))


def downsample_reference(x_nchw, weight, bias):
    """Pure-JAX reference: strided cross-correlation, same as nn.Conv2d."""
    y = lax.conv_general_dilated(
        x_nchw, weight, window_strides=(2, 2), padding=((1, 1), (1, 1)),
        dimension_numbers=("NCHW", "OIHW", "NCHW"))
    return y + bias[None, :, None, None]


if __name__ == "__main__":
    B, C, H, W = 2, 4, 16, 16
    key = jax.random.PRNGKey(0)
    kx, kw, kb = jax.random.split(key, 3)
    x = jax.random.normal(kx, (B, C, H, W), jnp.float32)

    # kaiming_normal_-style conv weight (fan_in = Cin*kH*kW).  init_weights zeroes
    # the bias; a nonzero bias is used here so the bias path is actually checked.
    fan_in = C * 3 * 3
    std = (2.0 / fan_in) ** 0.5
    weight = std * jax.random.normal(kw, (C, C, 3, 3), jnp.float32)
    bias = 0.1 * jax.random.normal(kb, (C,), jnp.float32)

    t_unused = jnp.zeros((B,), jnp.float32)  # `t` is ignored by the module
    y_ref = downsample_reference(x, weight, bias)

    # f32 path, forced H-tiling (tile_h=4 -> 2 row tiles) to exercise the halo path.
    y = jax.block_until_ready(downsample_forward(x, weight, bias, t_unused, tile_h=4))
    assert y.shape == (B, C, H // 2, W // 2), y.shape
    assert jnp.allclose(y, y_ref, atol=1e-4, rtol=1e-4), \
        float(jnp.max(jnp.abs(y - y_ref)))

    # Auto-picked tile (VMEM-accounting picker).
    y_auto = jax.block_until_ready(downsample_forward(x, weight, bias, t_unused))
    assert jnp.allclose(y_auto, y_ref, atol=1e-4, rtol=1e-4), \
        float(jnp.max(jnp.abs(y_auto - y_ref)))

    # bf16 MXU path (f32 accumulation, f32 element-wise), looser tolerance.
    y_bf16 = jax.block_until_ready(
        downsample_forward(x, weight, bias, t_unused, compute_dtype=jnp.bfloat16))
    assert y_bf16.shape == (B, C, H // 2, W // 2), y_bf16.shape
    assert jnp.allclose(y_bf16, y_ref, atol=1e-1, rtol=1e-1), \
        float(jnp.max(jnp.abs(y_bf16 - y_ref)))

    print("KERNEL_OK")
</pallas_src>

<mosaic_0001>
module attributes {stable_mosaic.version = 11 : i64} {
  func.func @_downsample_kernel(%arg0: i32, %arg1: i32, %arg2: memref<1x4x8x16xf32, #tpu.memory_space<vmem>>, %arg3: memref<1x1x8x16xf32, #tpu.memory_space<vmem>>, %arg4: memref<2x2x16x4xf32, #tpu.memory_space<vmem>>, %arg5: memref<1x4xf32, #tpu.memory_space<vmem>>, %arg6: memref<1x4x8x4xf32, #tpu.memory_space<vmem>>) attributes {dimension_semantics = [#tpu.dimension_semantics<parallel>, #tpu.dimension_semantics<parallel>], iteration_bounds = array<i64: 2, 2>, scalar_prefetch = 0 : i64, scratch_operands = 0 : i64, tpu.core_type = #tpu.core_type<tc>, window_params = [{transform_indices = @transform_0, window_bounds = array<i64: 1, 4, 8, 16>}, {transform_indices = @transform_1, window_bounds = array<i64: 1, 1, 8, 16>}, {pipeline_mode = #tpu.pipeline_mode<synchronous>, transform_indices = @transform_2, window_bounds = array<i64: 2, 2, 16, 4>}, {pipeline_mode = #tpu.pipeline_mode<synchronous>, transform_indices = @transform_3, window_bounds = array<i64: 1, 4>}, {transform_indices = @transform_4, window_bounds = array<i64: 1, 4, 8, 4>}]} {
    %c0 = arith.constant 0 : index
    %c0_0 = arith.constant 0 : index
    %c0_1 = arith.constant 0 : index
    %c0_2 = arith.constant 0 : index
    %0 = vector.load %arg2[%c0, %c0_0, %c0_1, %c0_2] : memref<1x4x8x16xf32, #tpu.memory_space<vmem>>, vector<1x4x8x16xf32>
    %1 = vector.shape_cast %0 : vector<1x4x8x16xf32> to vector<4x8x16xf32>
    %2 = vector.shape_cast %1 : vector<4x8x16xf32> to vector<32x16xf32>
    %c1 = arith.constant 1 : index
    %c1_3 = arith.constant 1 : index
    %c0_4 = arith.constant 0 : index
    %c0_5 = arith.constant 0 : index
    %3 = vector.load %arg4[%c1, %c1_3, %c0_4, %c0_5] : memref<2x2x16x4xf32, #tpu.memory_space<vmem>>, vector<1x1x16x4xf32>
    %4 = vector.shape_cast %3 : vector<1x1x16x4xf32> to vector<16x4xf32>
    %cst = arith.constant dense<0.000000e+00> : vector<32x4xf32>
    %5 = tpu.matmul %2, %4, %cst {dimension_numbers = #tpu.dot_dimension_numbers<[1], [0], [0], [1], [0, 0, 1, 1], [], []>} : vector<32x16xf32>, vector<16x4xf32>, vector<32x4xf32> -> vector<32x4xf32>
    %c1_6 = arith.constant 1 : index
    %c0_7 = arith.constant 0 : index
    %c0_8 = arith.constant 0 : index
    %c0_9 = arith.constant 0 : index
    %6 = vector.load %arg4[%c1_6, %c0_7, %c0_8, %c0_9] : memref<2x2x16x4xf32, #tpu.memory_space<vmem>>, vector<1x1x16x4xf32>
    %7 = vector.shape_cast %6 : vector<1x1x16x4xf32> to vector<16x4xf32>
    %cst_10 = arith.constant dense<0.000000e+00> : vector<32x4xf32>
    %8 = tpu.matmul %2, %7, %cst_10 {dimension_numbers = #tpu.dot_dimension_numbers<[1], [0], [0], [1], [0, 0, 1, 1], [], []>} : vector<32x16xf32>, vector<16x4xf32>, vector<32x4xf32> -> vector<32x4xf32>
    %c0_11 = arith.constant 0 : index
    %c1_12 = arith.constant 1 : index
    %c0_13 = arith.constant 0 : index
    %c0_14 = arith.constant 0 : index
    %9 = vector.load %arg4[%c0_11, %c1_12, %c0_13, %c0_14] : memref<2x2x16x4xf32, #tpu.memory_space<vmem>>, vector<1x1x16x4xf32>
    %10 = vector.shape_cast %9 : vector<1x1x16x4xf32> to vector<16x4xf32>
    %cst_15 = arith.constant dense<0.000000e+00> : vector<32x4xf32>
    %11 = tpu.matmul %2, %10, %cst_15 {dimension_numbers = #tpu.dot_dimension_numbers<[1], [0], [0], [1], [0, 0, 1, 1], [], []>} : vector<32x16xf32>, vector<16x4xf32>, vector<32x4xf32> -> vector<32x4xf32>
    %c0_16 = arith.constant 0 : index
    %c0_17 = arith.constant 0 : index
    %c0_18 = arith.constant 0 : index
    %c0_19 = arith.constant 0 : index
    %12 = vector.load %arg4[%c0_16, %c0_17, %c0_18, %c0_19] : memref<2x2x16x4xf32, #tpu.memory_space<vmem>>, vector<1x1x16x4xf32>
    %13 = vector.shape_cast %12 : vector<1x1x16x4xf32> to vector<16x4xf32>
    %cst_20 = arith.constant dense<0.000000e+00> : vector<32x4xf32>
    %14 = tpu.matmul %2, %13, %cst_20 {dimension_numbers = #tpu.dot_dimension_numbers<[1], [0], [0], [1], [0, 0, 1, 1], [], []>} : vector<32x16xf32>, vector<16x4xf32>, vector<32x4xf32> -> vector<32x4xf32>
    %15 = tpu.iota {dimensions = array<i32: 1>} : vector<4x8x4xi32>
    %16 = vector.shape_cast %15 : vector<4x8x4xi32> to vector<32x4xi32>
    %c0_i32 = arith.constant 0 : i32
    %17 = vector.broadcast %c0_i32 : i32 to vector<32x4xi32>
    %18 = arith.cmpi sgt, %16, %17 : vector<32x4xi32>
    %c0_21 = arith.constant 0 : index
    %c0_22 = arith.constant 0 : index
    %c0_23 = arith.constant 0 : index
    %c0_24 = arith.constant 0 : index
    %19 = vector.load %arg3[%c0_21, %c0_22, %c0_23, %c0_24] : memref<1x1x8x16xf32, #tpu.memory_space<vmem>>, vector<1x1x8x16xf32>
    %20 = vector.shape_cast %19 : vector<1x1x8x16xf32> to vector<8x16xf32>
    %c0_25 = arith.constant 0 : index
    %c1_26 = arith.constant 1 : index
    %c0_27 = arith.constant 0 : index
    %c0_28 = arith.constant 0 : index
    %21 = vector.load %arg4[%c0_25, %c1_26, %c0_27, %c0_28] : memref<2x2x16x4xf32, #tpu.memory_space<vmem>>, vector<1x1x16x4xf32>
    %22 = vector.shape_cast %21 : vector<1x1x16x4xf32> to vector<16x4xf32>
    %cst_29 = arith.constant dense<0.000000e+00> : vector<8x4xf32>
    %23 = tpu.matmul %20, %22, %cst_29 {dimension_numbers = #tpu.dot_dimension_numbers<[1], [0], [0], [1], [0, 0, 1, 1], [], []>} : vector<8x16xf32>, vector<16x4xf32>, vector<8x4xf32> -> vector<8x4xf32>
    %c0_30 = arith.constant 0 : index
    %c0_31 = arith.constant 0 : index
    %c0_32 = arith.constant 0 : index
    %c0_33 = arith.constant 0 : index
    %24 = vector.load %arg4[%c0_30, %c0_31, %c0_32, %c0_33] : memref<2x2x16x4xf32, #tpu.memory_space<vmem>>, vector<1x1x16x4xf32>
    %25 = vector.shape_cast %24 : vector<1x1x16x4xf32> to vector<16x4xf32>
    %cst_34 = arith.constant dense<0.000000e+00> : vector<8x4xf32>
    %26 = tpu.matmul %20, %25, %cst_34 {dimension_numbers = #tpu.dot_dimension_numbers<[1], [0], [0], [1], [0, 0, 1, 1], [], []>} : vector<8x16xf32>, vector<16x4xf32>, vector<8x4xf32> -> vector<8x4xf32>
    %cst_35 = arith.constant 0.000000e+00 : f32
    %27 = vector.broadcast %cst_35 : f32 to vector<1x4xf32>
    %28 = vector.extract_strided_slice %26 {offsets = [0, 0], sizes = [7, 4], strides = [1, 1]} : vector<8x4xf32> to vector<7x4xf32>
    %29 = tpu.concatenate %27, %28 in 0 : vector<1x4xf32>, vector<7x4xf32> -> vector<8x4xf32>
    %30 = arith.addf %23, %29 : vector<8x4xf32>
    %c0_i32_36 = arith.constant 0 : i32
    %31 = arith.cmpi sgt, %arg1, %c0_i32_36 : i32
    %32 = arith.extui %31 : i1 to i32
    %33 = arith.sitofp %32 : i32 to f32
    %34 = vector.broadcast %33 : f32 to vector<8x4xf32>
    %35 = arith.mulf %30, %34 : vector<8x4xf32>
    %cst_37 = arith.constant 0.000000e+00 : f32
    %36 = vector.broadcast %cst_37 : f32 to vector<1x4xf32>
    %37 = vector.extract_strided_slice %14 {offsets = [0, 0], sizes = [31, 4], strides = [1, 1]} : vector<32x4xf32> to vector<31x4xf32>
    %38 = tpu.concatenate %36, %37 in 0 : vector<1x4xf32>, vector<31x4xf32> -> vector<32x4xf32>
    %cst_38 = arith.constant 0.000000e+00 : f32
    %39 = vector.broadcast %cst_38 : f32 to vector<32x4xf32>
    %40 = arith.select %18, %38, %39 : vector<32x4xi1>, vector<32x4xf32>
    %41 = arith.addf %11, %40 : vector<32x4xf32>
    %42 = vector.extract_strided_slice %41 {offsets = [0, 0], sizes = [24, 4], strides = [1, 1]} : vector<32x4xf32> to vector<24x4xf32>
    %43 = tpu.concatenate %35, %42 in 0 : vector<8x4xf32>, vector<24x4xf32> -> vector<32x4xf32>
    %cst_39 = arith.constant 0.000000e+00 : f32
    %44 = vector.broadcast %cst_39 : f32 to vector<1x4xf32>
    %45 = vector.extract_strided_slice %8 {offsets = [0, 0], sizes = [31, 4], strides = [1, 1]} : vector<32x4xf32> to vector<31x4xf32>
    %46 = tpu.concatenate %44, %45 in 0 : vector<1x4xf32>, vector<31x4xf32> -> vector<32x4xf32>
    %cst_40 = arith.constant 0.000000e+00 : f32
    %47 = vector.broadcast %cst_40 : f32 to vector<32x4xf32>
    %48 = arith.select %18, %46, %47 : vector<32x4xi1>, vector<32x4xf32>
    %49 = arith.addf %5, %48 : vector<32x4xf32>
    %50 = arith.addf %49, %43 : vector<32x4xf32>
    %c0_41 = arith.constant 0 : index
    %c0_42 = arith.constant 0 : index
    %51 = vector.load %arg5[%c0_41, %c0_42] : memref<1x4xf32, #tpu.memory_space<vmem>>, vector<1x4xf32>
    %52 = vector.broadcast %51 : vector<1x4xf32> to vector<32x4xf32>
    %53 = arith.addf %50, %52 : vector<32x4xf32>
    %54 = vector.shape_cast %53 : vector<32x4xf32> to vector<4x8x4xf32>
    %c0_43 = arith.constant 0 : index
    %c0_44 = arith.constant 0 : index
    %c0_45 = arith.constant 0 : index
    %c0_46 = arith.constant 0 : index
    %55 = vector.load %arg6[%c0_43, %c0_44, %c0_45, %c0_46] : memref<1x4x8x4xf32, #tpu.memory_space<vmem>>, vector<1x4x8x4xf32>
    %56 = vector.shape_cast %55 : vector<1x4x8x4xf32> to vector<4x8x4xf32>
    %57 = vector.shape_cast %54 : vector<4x8x4xf32> to vector<1x4x8x4xf32>
    tpu.vector_store %arg6[%c0_43, %c0_44, %c0_45, %c0_46], %57 {strides = array<i32>} : memref<1x4x8x4xf32, #tpu.memory_space<vmem>>, vector<1x4x8x4xf32>,
    return
  }
  func.func @transform_0(%arg0: i32, %arg1: i32) -> (i32, i32, i32, i32) {
    %c0_i32 = arith.constant 0 : i32
    %c0_i32_0 = arith.constant 0 : i32
    %c0_i32_1 = arith.constant 0 : i32
    return %arg0, %arg1, %c0_i32, %c0_i32_0 : i32, i32, i32, i32
  }
  func.func @transform_1(%arg0: i32, %arg1: i32) -> (i32, i32, i32, i32) {
    %c4_i32 = arith.constant 4 : i32
    %0 = arith.muli %arg1, %c4_i32 : i32
    %c1_i32 = arith.constant 1 : i32
    %1 = arith.subi %0, %c1_i32 : i32
    %c0_i32 = arith.constant 0 : i32
    %2 = arith.maxsi %1, %c0_i32 : i32
    %c0_i32_0 = arith.constant 0 : i32
    %c0_i32_1 = arith.constant 0 : i32
    %c0_i32_2 = arith.constant 0 : i32
    return %arg0, %2, %c0_i32_0, %c0_i32_1 : i32, i32, i32, i32
  }
  func.func @transform_2(%arg0: i32, %arg1: i32) -> (i32, i32, i32, i32) {
    %c0_i32 = arith.constant 0 : i32
    %c0_i32_0 = arith.constant 0 : i32
    %c0_i32_1 = arith.constant 0 : i32
    %c0_i32_2 = arith.constant 0 : i32
    %c0_i32_3 = arith.constant 0 : i32
    return %c0_i32, %c0_i32_0, %c0_i32_1, %c0_i32_2 : i32, i32, i32, i32
  }
  func.func @transform_3(%arg0: i32, %arg1: i32) -> (i32, i32) {
    %c0_i32 = arith.constant 0 : i32
    %c0_i32_0 = arith.constant 0 : i32
    %c0_i32_1 = arith.constant 0 : i32
    return %c0_i32, %c0_i32_0 : i32, i32
  }
  func.func @transform_4(%arg0: i32, %arg1: i32) -> (i32, i32, i32, i32) {
    %c0_i32 = arith.constant 0 : i32
    %c0_i32_0 = arith.constant 0 : i32
    %c0_i32_1 = arith.constant 0 : i32
    return %arg0, %arg1, %c0_i32, %c0_i32_0 : i32, i32, i32, i32
  }
}

</mosaic_0001>

<llo_original>
// kernel: tpu_custom_call.1
$region0: #{tpu_custom_call.1}
  #allocation0 [shape = 'u32[]', space=smem, size = 0x4, offset = 0x4, fixed_abs, tag = 'smem constant byte address 0x4 - core index']
  #allocation1 [shape = 'u32[72,128]{1,0:T(1,128)}', space=vmem, size = 0x9000, scoped, tag = 'internal scratch']
  %s0 = inlined_call_operand.hbm [shape: f32[2,8,8,16], index: 0, kind: input, shape index: {}]
  %s1 = inlined_call_operand.hbm [shape: f32[2,8,8,16], index: 1, kind: input, shape index: {}]
  %s2 = inlined_call_operand.vmem [shape: f32[2,2,16,4], index: 2, kind: input, shape index: {}]
  %s3 = inlined_call_operand.vmem [shape: f32[1,4], index: 3, kind: input, shape index: {}]
  %s4 = inlined_call_operand.vmem [shape: f32[2,8,8,4], index: 4, kind: output, shape index: {}]
  %s5 = sld [smem:[#allocation0]]
  $region57: #{tpu_custom_call.1} parent=0
    _
  %s7 = ssub.s32 1, %s5
  %s8 = scalar_select 0, %s7, %s5
  $region1: #{tpu_custom_call.1} parent=0
    #allocation2 [shape = 'u8[32768]{0}', space=vmem, size = 0x8000, scoped, tag = 'input window, operand 0']
    #allocation3 [shape = 's32[2]{0}', space=sflag, size = 0x8, scoped, tag = 'scoped memory for tpu_custom_call.1']
    #allocation4 [shape = 'u8[8192]{0}', space=vmem, size = 0x2000, scoped, tag = 'input window, operand 1']
    #allocation5 [shape = 's32[2]{0}', space=sflag, size = 0x8, scoped, tag = 'scoped memory for tpu_custom_call.1']
    %9 = vsyncpa [#allocation3], 0
    %s10 = scalar_lea.sflag [#allocation3], 1
    %11 = vsyncpa %s10, 0
    %12 = vsyncpa [#allocation5], 0
    %s13 = scalar_lea.sflag [#allocation5], 1
    %14 = vsyncpa %s13, 0
    loop: start=0, step=1, limit=6
    $region2: #{tpu_custom_call.1} parent=1 // loop_pre_header
      _
    $region3: #{tpu_custom_call.1} parent=1 // loop_header
      %s16 = sphi 0, %s20
      %p17 = scmp.ge.s32.totalorder %s16, 6
      %s23 = sphi 0, %s35
      %s24 = sphi 0, %s31
      %s25 = sphi 0, %s23
      %s26 = sphi 0, %s24
      %s27 = sphi 0, %s25
      %s28 = sphi 0, %s26
      %s40 = sphi 0, %s42
      %s43 = sphi 0, %s40
      %s44 = sphi 0, %s43
      %s60 = sphi 0, %s44
      %s76 = sphi 0, %s78
      %s79 = sphi 0, %s76
      %s80 = sphi 0, %s79
      %s96 = sphi 0, %s80
      %s100 = sphi 0, %s100
      %s102 = sphi 0, %s100
      %s103 = sphi 0, %s102
      %s117 = sphi 0, %s103
      %s121 = sphi 0, %s121
      %s123 = sphi 0, %s121
      %s124 = sphi 0, %s123
      %s138 = sphi 0, %s124
      %s146 = sphi 0, %s148
      %s149 = sphi 0, %s146
      %s150 = sphi 0, %s149
      %s166 = sphi 0, %s150
    $region4: #{tpu_custom_call.1} parent=1 // loop_header_branch
      %19 = sbr.rel (%p17) target = $region8
    $region5: #{tpu_custom_call.1} parent=1 // loop_body
      %s21 = ssub.s32 %s16, 1
      %s22 = ssub.s32 %s16, 2
      %s29 = sadd.s32 1, %s24
      %p30 = scmp.ge.s32.totalorder %s29, 2
      %s31 = scalar_select %p30, 0, %s29
      %s32 = sadd.s32 1, %s23
      %s33 = scalar_select %p30, %s32, %s23
      %p34 = scmp.ge.s32.totalorder %s33, 2
      %s35 = scalar_select %p34, 0, %s33
      %s36 = ssub.s32 %s23, %s35
      %s37 = ssub.s32 %s24, %s31
      %s38 = sor.u32 %s36, %s37
      %p39 = scmp.eq.s32.totalorder %s38, 0
      %s41 = sadd.s32 %s40, 1
      %s42 = scalar_select %p39, %s40, %s41
      %p45 = pneg %p39
      %p46 = scmp.eq.s32.totalorder %s16, 3
      %p47 = por %p45, %p46
      %p48 = scmp.ne.s32.totalorder %s40, %s43
      %p49 = scmp.eq.s32.totalorder %s16, 0
      %p50 = por %p48, %p49
      %p51 = scmp.ne.s32.totalorder %s40, %s43
      %p52 = scmp.eq.s32.totalorder %s21, 3
      %p53 = por %p51, %p52
      %p54 = scmp.ne.s32.totalorder %s43, %s44
      %p55 = scmp.eq.s32.totalorder %s21, 0
      %p56 = por %p54, %p55
      %p57 = scmp.ne.s32.totalorder %s43, %s44
      %p58 = scmp.eq.s32.totalorder %s22, 3
      %p59 = por %p57, %p58
      %p61 = scmp.ne.s32.totalorder %s44, %s60
      %p62 = scmp.eq.s32.totalorder %s22, 0
      %p63 = por %p61, %p62
      %s64 = smul.u32 %s24, 4
      %s65 = ssub.s32 %s64, 1
      %p66 = scmp.gt.s32.totalorder %s65, 0
      %s67 = scalar_select %p66, %s65, 0
      %s68 = smul.u32 %s31, 4
      %s69 = ssub.s32 %s68, 1
      %p70 = scmp.gt.s32.totalorder %s69, 0
      %s71 = scalar_select %p70, %s69, 0
      %s72 = ssub.s32 %s23, %s35
      %s73 = ssub.s32 %s67, %s71
      %s74 = sor.u32 %s72, %s73
      %p75 = scmp.eq.s32.totalorder %s74, 0
      %s77 = sadd.s32 %s76, 1
      %s78 = scalar_select %p75, %s76, %s77
      %p81 = pneg %p75
      %p82 = scmp.eq.s32.totalorder %s16, 3
      %p83 = por %p81, %p82
      %p84 = scmp.ne.s32.totalorder %s76, %s79
      %p85 = scmp.eq.s32.totalorder %s16, 0
      %p86 = por %p84, %p85
      %p87 = scmp.ne.s32.totalorder %s76, %s79
      %p88 = scmp.eq.s32.totalorder %s21, 3
      %p89 = por %p87, %p88
      %p90 = scmp.ne.s32.totalorder %s79, %s80
      %p91 = scmp.eq.s32.totalorder %s21, 0
      %p92 = por %p90, %p91
      %p93 = scmp.ne.s32.totalorder %s79, %s80
      %p94 = scmp.eq.s32.totalorder %s22, 3
      %p95 = por %p93, %p94
      %p97 = scmp.ne.s32.totalorder %s80, %s96
      %p98 = scmp.eq.s32.totalorder %s22, 0
      %p99 = por %p97, %p98
      %s101 = sadd.s32 %s100, 1
      %p104 = scmp.eq.s32.totalorder %s16, 3
      %p105 = scmp.ne.s32.totalorder %s100, %s102
      %p106 = scmp.eq.s32.totalorder %s16, 0
      %p107 = por %p105, %p106
      %p108 = scmp.ne.s32.totalorder %s100, %s102
      %p109 = scmp.eq.s32.totalorder %s21, 3
      %p110 = por %p108, %p109
      %p111 = scmp.ne.s32.totalorder %s102, %s103
      %p112 = scmp.eq.s32.totalorder %s21, 0
      %p113 = por %p111, %p112
      %p114 = scmp.ne.s32.totalorder %s102, %s103
      %p115 = scmp.eq.s32.totalorder %s22, 3
      %p116 = por %p114, %p115
      %p118 = scmp.ne.s32.totalorder %s103, %s117
      %p119 = scmp.eq.s32.totalorder %s22, 0
      %p120 = por %p118, %p119
      %s122 = sadd.s32 %s121, 1
      %p125 = scmp.eq.s32.totalorder %s16, 3
      %p126 = scmp.ne.s32.totalorder %s121, %s123
      %p127 = scmp.eq.s32.totalorder %s16, 0
      %p128 = por %p126, %p127
      %p129 = scmp.ne.s32.totalorder %s121, %s123
      %p130 = scmp.eq.s32.totalorder %s21, 3
      %p131 = por %p129, %p130
      %p132 = scmp.ne.s32.totalorder %s123, %s124
      %p133 = scmp.eq.s32.totalorder %s21, 0
      %p134 = por %p132, %p133
      %p135 = scmp.ne.s32.totalorder %s123, %s124
      %p136 = scmp.eq.s32.totalorder %s22, 3
      %p137 = por %p135, %p136
      %p139 = scmp.ne.s32.totalorder %s124, %s138
      %p140 = scmp.eq.s32.totalorder %s22, 0
      %p141 = por %p139, %p140
      %s142 = ssub.s32 %s23, %s35
      %s143 = ssub.s32 %s24, %s31
      %s144 = sor.u32 %s142, %s143
      %p145 = scmp.eq.s32.totalorder %s144, 0
      %s147 = sadd.s32 %s146, 1
      %s148 = scalar_select %p145, %s146, %s147
      %p151 = pneg %p145
      %p152 = scmp.eq.s32.totalorder %s16, 3
      %p153 = por %p151, %p152
      %p154 = scmp.ne.s32.totalorder %s146, %s149
      %p155 = scmp.eq.s32.totalorder %s16, 0
      %p156 = por %p154, %p155
      %p157 = scmp.ne.s32.totalorder %s146, %s149
      %p158 = scmp.eq.s32.totalorder %s21, 3
      %p159 = por %p157, %p158
      %p160 = scmp.ne.s32.totalorder %s149, %s150
      %p161 = scmp.eq.s32.totalorder %s21, 0
      %p162 = por %p160, %p161
      %p163 = scmp.ne.s32.totalorder %s149, %s150
      %p164 = scmp.eq.s32.totalorder %s22, 3
      %p165 = por %p163, %p164
      %p167 = scmp.ne.s32.totalorder %s150, %s166
      %p168 = scmp.eq.s32.totalorder %s22, 0
      %p169 = por %p167, %p168
      %p170 = scmp.le.s32.totalorder 1, %s16
      %p171 = scmp.lt.s32.totalorder %s16, 5
      %p172 = pnand %p170, %p171
      %p173 = pneg %p172
      // Predicated region
      $region9: #{tpu_custom_call.1} parent=5 // pred_check
        _
      $region10: #{tpu_custom_call.1} parent=5 // pred_check_branch
        %175 = sbr.rel (%p172) target = $region12
      $region11: #{tpu_custom_call.1} parent=5 // pred_region
        %s176 = ssub.s32 %s16, 1
        // Predicated region
        $region13: #{tpu_custom_call.1} parent=11 // pred_check
          %p177 = pneg %p113
        $region14: #{tpu_custom_call.1} parent=11 // pred_check_branch
          %179 = sbr.rel (%p177) target = $region16
        $region15: #{tpu_custom_call.1} parent=11 // pred_region
          _
        $region16: #{tpu_custom_call.1} parent=11 // pred_fallthru
          _
        // Predicated region
        $region17: #{tpu_custom_call.1} parent=11 // pred_check
          %p180 = pneg %p134
        $region18: #{tpu_custom_call.1} parent=11 // pred_check_branch
          %182 = sbr.rel (%p180) target = $region20
        $region19: #{tpu_custom_call.1} parent=11 // pred_region
          _
        $region20: #{tpu_custom_call.1} parent=11 // pred_fallthru
          _
      $region12: #{tpu_custom_call.1} parent=5 // pred_fallthru
        _
      %p183 = scmp.lt.s32.totalorder %s16, 4
      // Predicated region
      $region21: #{tpu_custom_call.1} parent=5 // pred_check
        %p184 = pneg %p183
      $region22: #{tpu_custom_call.1} parent=5 // pred_check_branch
        %186 = sbr.rel (%p184) target = $region24
      $region23: #{tpu_custom_call.1} parent=5 // pred_region
        // Predicated region
        $region25: #{tpu_custom_call.1} parent=23 // pred_check
          %p187 = pneg %p50
        $region26: #{tpu_custom_call.1} parent=23 // pred_check_branch
          %189 = sbr.rel (%p187) target = $region28
        $region27: #{tpu_custom_call.1} parent=23 // pred_region
          %s190 = sand.u32 %s40, 1
          %s191 = scalar_lea.sflag [#allocation3], %s190
          %s192 = sand.u32 %s40, 1
          %s193 = smul.addr %s192, 32
          %s194 = scalar_lea.vmem [#allocation2], %s193
          %s195 = smul.u32 4, %s24
          %197 = vsyncadd %s191, 0
          %s198 = smul.addr %s23, 8
          %s199 = sadd.s32 %s195, %s198
          %s200 = smul.addr %s199, 8
          %s201 = scalar_lea.hbm %s0, %s200
          %s202 = sshll.u32 %s201, 4
          %s203 = int_to_ptr.hbm [resolvable:$true] %s202
          %s204 = sshll.u32 %s194, 4
          %s205 = int_to_ptr.vmem [resolvable:$true] %s204
          %210 = dma.hbm_to_vmem [thread:$0]  %s203, 512, %s205, %s191, 128, 128, 8
        $region28: #{tpu_custom_call.1} parent=23 // pred_fallthru
          _
        // Predicated region
        $region29: #{tpu_custom_call.1} parent=23 // pred_check
          %p211 = pneg %p86
        $region30: #{tpu_custom_call.1} parent=23 // pred_check_branch
          %213 = sbr.rel (%p211) target = $region32
        $region31: #{tpu_custom_call.1} parent=23 // pred_region
          %s214 = sand.u32 %s76, 1
          %s215 = scalar_lea.sflag [#allocation5], %s214
          %s216 = sand.u32 %s76, 1
          %s217 = smul.addr %s216, 8
          %s218 = scalar_lea.vmem [#allocation4], %s217
          %s219 = smul.u32 %s24, 4
          %s220 = ssub.s32 %s219, 1
          %p221 = scmp.gt.s32.totalorder %s220, 0
          %s222 = scalar_select %p221, %s220, 0
          %224 = vsyncadd %s215, 0
          %s225 = smul.addr %s23, 8
          %s226 = sadd.s32 %s222, %s225
          %s227 = smul.addr %s226, 8
          %s228 = scalar_lea.hbm %s1, %s227
          %s230 = sshll.u32 %s228, 4
          %s231 = int_to_ptr.hbm [resolvable:$true] %s230
          %s232 = sshll.u32 %s218, 4
          %s233 = int_to_ptr.vmem [resolvable:$true] %s232
          %235 = dma.hbm_to_vmem [thread:$0]  %s231, 128, %s233, %s215
        $region32: #{tpu_custom_call.1} parent=23 // pred_fallthru
          _
      $region24: #{tpu_custom_call.1} parent=5 // pred_fallthru
        _
      %p236 = scmp.le.s32.totalorder 1, %s16
      %p237 = scmp.lt.s32.totalorder %s16, 5
      %p238 = pnand %p236, %p237
      %p239 = pneg %p238
      // Predicated region
      $region33: #{tpu_custom_call.1} parent=5 // pred_check
        _
      $region34: #{tpu_custom_call.1} parent=5 // pred_check_branch
        %241 = sbr.rel (%p238) target = $region36
      $region35: #{tpu_custom_call.1} parent=5 // pred_region
        %s242 = ssub.s32 %s16, 1
        %s243 = sand.u32 %s43, 1
        %s244 = scalar_lea.sflag [#allocation3], %s243
        %s245 = sand.u32 %s43, 1
        %s246 = smul.addr %s245, 32
        %s247 = scalar_lea.vmem [#allocation2], %s246
        // Predicated region
        $region37: #{tpu_custom_call.1} parent=35 // pred_check
          %p248 = pneg %p56
        $region38: #{tpu_custom_call.1} parent=35 // pred_check_branch
          %250 = sbr.rel (%p248) target = $region40
        $region39: #{tpu_custom_call.1} parent=35 // pred_region
          %252 = dma.done %s244, 512
        $region40: #{tpu_custom_call.1} parent=35 // pred_fallthru
          _
        %s253 = sand.u32 %s79, 1
        %s254 = scalar_lea.sflag [#allocation5], %s253
        %s255 = sand.u32 %s79, 1
        %s256 = smul.addr %s255, 8
        %s257 = scalar_lea.vmem [#allocation4], %s256
        // Predicated region
        $region41: #{tpu_custom_call.1} parent=35 // pred_check
          %p258 = pneg %p92
        $region42: #{tpu_custom_call.1} parent=35 // pred_check_branch
          %260 = sbr.rel (%p258) target = $region44
        $region43: #{tpu_custom_call.1} parent=35 // pred_region
          %262 = dma.done %s254, 128
        $region44: #{tpu_custom_call.1} parent=35 // pred_fallthru
          _
        %s263 = sand.u32 %s43, 1
        %s264 = scalar_lea.sflag [#allocation3], %s263
        %s265 = sand.u32 %s43, 1
        %s266 = smul.addr %s265, 32
        %s267 = scalar_lea.vmem [#allocation2], %s266
        %p268 = pneg %p56
        %p269 = pneg %p53
        %s270 = sand.u32 %s79, 1
        %s271 = scalar_lea.sflag [#allocation5], %s270
        %s272 = sand.u32 %s79, 1
        %s273 = smul.addr %s272, 8
        %s274 = scalar_lea.vmem [#allocation4], %s273
        %p275 = pneg %p92
        %p276 = pneg %p89
        %p277 = pneg %p113
        %p278 = pneg %p110
        %p279 = pneg %p134
        %p280 = pneg %p131
        %p281 = pneg %p162
        %p282 = pneg %p159
        %s283 = smul.u32 4, %s26
        %p284 = scmp.lt.s32.totalorder %s25, 1
        %s285 = scalar_select %p284, %s25, 1
        %p286 = scmp.lt.s32.totalorder %s283, 7
        %s287 = scalar_select %p286, %s283, 7
        %s288 = smul.addr %s285, 8
        %s289 = sadd.s32 %s287, %s288
        %s290 = smul.addr %s289, 8
        %s291 = scalar_lea.vmem %s4, %s290
        %s292 = smul.u32 4, %s26
        %s293 = smul.u32 %s26, 4
        %s294 = ssub.s32 %s293, 1
        %p295 = scmp.gt.s32.totalorder %s294, 0
        %s296 = scalar_select %p295, %s294, 0
        %s297 = smul.u32 4, %s26
        %p298 = scmp.lt.s32.totalorder %s25, 1
        %s299 = scalar_select %p298, %s25, 1
        %p300 = scmp.lt.s32.totalorder %s297, 7
        %s301 = scalar_select %p300, %s297, 7
        %s302 = smul.addr %s299, 8
        %s303 = sadd.s32 %s301, %s302
        %s304 = smul.addr %s303, 8
        %s305 = scalar_lea.vmem %s4, %s304
        %s306 = smul.u32 4, %s26
        %v307 = vld [vmem:[%s247] sm:$0xff]
        %v308 = vld [vmem:[%s247 + $0x8] sm:$0xff]
        %v309 = vld [vmem:[%s247 + $0x10] sm:$0xff]
        %v310 = vld [vmem:[%s247 + $0x18] sm:$0xff]
        %s311 = scalar_lea.vmem %s2, 48
        %v312 = vld [vmem:[%s311] sm:$0xff]
        %v313 = vld [vmem:[%s311 + $0x8] sm:$0xff]
        %s314 = scalar_lea.vmem %s2, 32
        %v315 = vld [vmem:[%s314] sm:$0xff]
        %v316 = vld [vmem:[%s314 + $0x8] sm:$0xff]
        %vm317 = vcmask 130048
        %v319 = vsel %vm317, %v307, 0
        %v322 = vsel %vm317, %v308, 0
        %v325 = vsel %vm317, %v309, 0
        %v328 = vsel %vm317, %v310, 0
        %330 = vmatpush.msra.mxu0 0.0
        %331 = vmatpush.msra.mxu0 0.0
        %332 = vmatpush.msra.mxu0 0.0
        %333 = vmatpush.msra.mxu0 0.0
        %334 = vmatpush.msra.mxu0 0.0
        %335 = vmatpush.msra.mxu0 0.0
        %336 = vmatpush.msra.mxu0 0.0
        %337 = vmatpush.msra.mxu0 0.0
        %338 = vmatpush.msra.mxu0 0.0
        %339 = vmatpush.msra.mxu0 0.0
        %340 = vmatpush.msra.mxu0 0.0
        %341 = vmatpush.msra.mxu0 0.0
        %342 = vmatpush.msra.mxu0 0.0
        %343 = vmatpush.msra.mxu0 0.0
        %344 = vmatpush.msra.mxu0 %v316
        %345 = vmatpush.msra.mxu0 %v315
        %346 = vmatmul.f32.gmra.mxu0 %v319
        %v347 = vpop.f32.mrf.mxu0
        %v348 = vadd.f32 0.0, %v347
        %349 = vmatmul.f32.gmra.mxu0 %v322
        %v350 = vpop.f32.mrf.mxu0
        %v351 = vadd.f32 0.0, %v350
        %352 = vmatmul.f32.gmra.mxu0 %v325
        %v353 = vpop.f32.mrf.mxu0
        %v354 = vadd.f32 0.0, %v353
        %355 = vmatmul.f32.gmra.mxu0 %v328
        %v356 = vpop.f32.mrf.mxu0
        %v357 = vadd.f32 0.0, %v356
        %358 = vdwg.mxu0
        %s359 = scalar_lea.vmem %s2, 16
        %v360 = vld [vmem:[%s359] sm:$0xff]
        %v361 = vld [vmem:[%s359 + $0x8] sm:$0xff]
        %v362 = vld [vmem:[%s2] sm:$0xff]
        %v363 = vld [vmem:[%s2 + $0x8] sm:$0xff]
        %364 = vmatpush.msra.mxu0 0.0
        %365 = vmatpush.msra.mxu0 0.0
        %366 = vmatpush.msra.mxu0 0.0
        %367 = vmatpush.msra.mxu0 0.0
        %368 = vmatpush.msra.mxu0 0.0
        %369 = vmatpush.msra.mxu0 0.0
        %370 = vmatpush.msra.mxu0 0.0
        %371 = vmatpush.msra.mxu0 0.0
        %372 = vmatpush.msra.mxu0 0.0
        %373 = vmatpush.msra.mxu0 0.0
        %374 = vmatpush.msra.mxu0 0.0
        %375 = vmatpush.msra.mxu0 0.0
        %376 = vmatpush.msra.mxu0 0.0
        %377 = vmatpush.msra.mxu0 0.0
        %378 = vmatpush.msra.mxu0 %v363
        %379 = vmatpush.msra.mxu0 %v362
        %380 = vmatmul.f32.gmra.mxu0 %v319
        %v381 = vpop.f32.mrf.mxu0
        %v382 = vadd.f32 0.0, %v381
        %383 = vmatmul.f32.gmra.mxu0 %v322
        %v384 = vpop.f32.mrf.mxu0
        %v385 = vadd.f32 0.0, %v384
        %386 = vmatmul.f32.gmra.mxu0 %v325
        %v387 = vpop.f32.mrf.mxu0
        %v388 = vadd.f32 0.0, %v387
        %389 = vmatmul.f32.gmra.mxu0 %v328
        %v390 = vpop.f32.mrf.mxu0
        %391 = vdwg.mxu0
        %v392 = vlaneseq
        %v393 = vshrl.u32 %v392, 7
        %vm394 = vcmp.gt.s32.totalorder %v393, 0
        %v395 = vld [vmem:[%s257] sm:$0xff]
        %v397 = vsel %vm317, %v395, 0
        %399 = vmatpush.msra.mxu0 0.0
        %400 = vmatpush.msra.mxu0 0.0
        %401 = vmatpush.msra.mxu0 0.0
        %402 = vmatpush.msra.mxu0 0.0
        %403 = vmatpush.msra.mxu0 0.0
        %404 = vmatpush.msra.mxu0 0.0
        %405 = vmatpush.msra.mxu0 0.0
        %406 = vmatpush.msra.mxu0 0.0
        %407 = vmatpush.msra.mxu0 0.0
        %408 = vmatpush.msra.mxu0 0.0
        %409 = vmatpush.msra.mxu0 0.0
        %410 = vmatpush.msra.mxu0 0.0
        %411 = vmatpush.msra.mxu0 0.0
        %412 = vmatpush.msra.mxu0 0.0
        %413 = vmatpush.msra.mxu0 %v363
        %414 = vmatpush.msra.mxu0 %v362
        %415 = vmatmul.f32.gmra.mxu0 %v397
        %v416 = vpop.f32.mrf.mxu0
        %v417 = vadd.f32 0.0, %v416
        %418 = vdwg.mxu0
        %v420 = vrot.slane %v417, 7
        %vm422 = vcmask 1040384
        %v423 = vsel %vm422, 0.0, %v420
        %424 = vmatpush.msra.mxu0 0.0
        %425 = vmatpush.msra.mxu0 0.0
        %426 = vmatpush.msra.mxu0 0.0
        %427 = vmatpush.msra.mxu0 0.0
        %428 = vmatpush.msra.mxu0 0.0
        %429 = vmatpush.msra.mxu0 0.0
        %430 = vmatpush.msra.mxu0 0.0
        %431 = vmatpush.msra.mxu0 0.0
        %432 = vmatpush.msra.mxu0 0.0
        %433 = vmatpush.msra.mxu0 0.0
        %434 = vmatpush.msra.mxu0 0.0
        %435 = vmatpush.msra.mxu0 0.0
        %436 = vmatpush.msra.mxu0 0.0
        %437 = vmatpush.msra.mxu0 0.0
        %438 = vmatpush.msra.mxu0 %v361
        %439 = vmatpush.msra.mxu0 %v360
        %440 = vmatmul.f32.gmra.mxu0 %v397
        %v441 = vpop.f32.mrf.mxu0
        %v442 = vadd.f32 %v423, %v441
        %443 = vdwg.mxu0
        %p444 = scmp.gt.s32.totalorder %s26, 0
        %s445 = scalar_select %p444, 1, 0
        %s446 = scvt.s32.f32 %s445
        %v447 = vstv %s446
        %v448 = vmul.f32 %v442, %v447
        %v452 = vrot.slane %v382, 7
        %v453 = vrot.slane %v385, 7
        %v454 = vsel %vm422, %v452, %v453
        %v455 = vrot.slane %v388, 7
        %v456 = vsel %vm422, %v453, %v455
        %v460 = vsel %vm422, 0.0, %v452
        %v461 = vsel %vm394, %v460, 0.0
        %v462 = vsel %vm394, %v454, 0.0
        %v463 = vsel %vm394, %v456, 0.0
        %464 = vmatpush.msra.mxu0 0.0
        %465 = vmatpush.msra.mxu0 0.0
        %466 = vmatpush.msra.mxu0 0.0
        %467 = vmatpush.msra.mxu0 0.0
        %468 = vmatpush.msra.mxu0 0.0
        %469 = vmatpush.msra.mxu0 0.0
        %470 = vmatpush.msra.mxu0 0.0
        %471 = vmatpush.msra.mxu0 0.0
        %472 = vmatpush.msra.mxu0 0.0
        %473 = vmatpush.msra.mxu0 0.0
        %474 = vmatpush.msra.mxu0 0.0
        %475 = vmatpush.msra.mxu0 0.0
        %476 = vmatpush.msra.mxu0 0.0
        %477 = vmatpush.msra.mxu0 0.0
        %478 = vmatpush.msra.mxu0 %v361
        %479 = vmatpush.msra.mxu0 %v360
        %480 = vmatmul.f32.gmra.mxu0 %v319
        %v481 = vpop.f32.mrf.mxu0
        %v482 = vadd.f32 %v461, %v481
        %483 = vmatmul.f32.gmra.mxu0 %v322
        %v484 = vpop.f32.mrf.mxu0
        %v485 = vadd.f32 %v462, %v484
        %486 = vmatmul.f32.gmra.mxu0 %v325
        %v487 = vpop.f32.mrf.mxu0
        %v488 = vadd.f32 %v463, %v487
        %489 = vmatmul.f32.gmra.mxu0 %v328
        %v490 = vpop.f32.mrf.mxu0
        %491 = vdwg.mxu0
        %v496 = vrot.slane %v348, 7
        %v497 = vrot.slane %v351, 7
        %v498 = vsel %vm422, %v496, %v497
        %v499 = vrot.slane %v354, 7
        %v500 = vsel %vm422, %v497, %v499
        %v501 = vrot.slane %v357, 7
        %v502 = vsel %vm422, %v499, %v501
        %v507 = vsel %vm422, 0.0, %v496
        %v508 = vsel %vm394, %v507, 0.0
        %v509 = vsel %vm394, %v498, 0.0
        %v510 = vsel %vm394, %v500, 0.0
        %v511 = vsel %vm394, %v502, 0.0
        %512 = vmatpush.msra.mxu0 0.0
        %513 = vmatpush.msra.mxu0 0.0
        %514 = vmatpush.msra.mxu0 0.0
        %515 = vmatpush.msra.mxu0 0.0
        %516 = vmatpush.msra.mxu0 0.0
        %517 = vmatpush.msra.mxu0 0.0
        %518 = vmatpush.msra.mxu0 0.0
        %519 = vmatpush.msra.mxu0 0.0
        %520 = vmatpush.msra.mxu0 0.0
        %521 = vmatpush.msra.mxu0 0.0
        %522 = vmatpush.msra.mxu0 0.0
        %523 = vmatpush.msra.mxu0 0.0
        %524 = vmatpush.msra.mxu0 0.0
        %525 = vmatpush.msra.mxu0 0.0
        %526 = vmatpush.msra.mxu0 %v313
        %527 = vmatpush.msra.mxu0 %v312
        %528 = vmatmul.f32.gmra.mxu0 %v319
        %v529 = vpop.f32.mrf.mxu0
        %v530 = vadd.f32 %v508, %v529
        %531 = vmatmul.f32.gmra.mxu0 %v322
        %v532 = vpop.f32.mrf.mxu0
        %v533 = vadd.f32 %v509, %v532
        %534 = vmatmul.f32.gmra.mxu0 %v325
        %v535 = vpop.f32.mrf.mxu0
        %v536 = vadd.f32 %v510, %v535
        %537 = vmatmul.f32.gmra.mxu0 %v328
        %v538 = vpop.f32.mrf.mxu0
        %v539 = vadd.f32 %v511, %v538
        %540 = vdwg.mxu0
        %v541 = vadd.f32 %v530, %v448
        %v542 = vadd.f32 %v533, %v482
        %v543 = vadd.f32 %v536, %v485
        %v544 = vadd.f32 %v539, %v488
        %v545 = vld [vmem:[%s3] sm:$0x1]
        %v547 = vperm.slane %v545, 0
        %v549 = vadd.f32 %v541, %v547
        %v550 = vadd.f32 %v542, %v547
        %v551 = vadd.f32 %v543, %v547
        %v552 = vadd.f32 %v544, %v547
        %vm553 = vcmask 31744
        %554 = vst.msk [vmem:[%s305] sm:$0xff] %vm553, %v549
        %555 = vst.msk [vmem:[%s305 + $0x8] sm:$0xff] %vm553, %v550
        %556 = vst.msk [vmem:[%s305 + $0x10] sm:$0xff] %vm553, %v551
        %557 = vst.msk [vmem:[%s305 + $0x18] sm:$0xff] %vm553, %v552
        %s558 = smul.u32 4, %s26
        %p559 = scmp.lt.s32.totalorder %s25, 1
        %s560 = scalar_select %p559, %s25, 1
        %p561 = scmp.lt.s32.totalorder %s558, 7
        %s562 = scalar_select %p561, %s558, 7
        %s563 = smul.addr %s560, 8
        %s564 = sadd.s32 %s562, %s563
        %s565 = smul.addr %s564, 8
        %s566 = scalar_lea.vmem %s4, %s565
        // Predicated region
        $region45: #{tpu_custom_call.1} parent=35 // pred_check
          %p567 = pneg %p159
        $region46: #{tpu_custom_call.1} parent=35 // pred_check_branch
          %569 = sbr.rel (%p567) target = $region48
        $region47: #{tpu_custom_call.1} parent=35 // pred_region
          %s570 = smul.u32 4, %s26
        $region48: #{tpu_custom_call.1} parent=35 // pred_fallthru
          _
      $region36: #{tpu_custom_call.1} parent=5 // pred_fallthru
        _
      %p571 = scmp.le.s32.totalorder 2, %s16
      // Predicated region
      $region49: #{tpu_custom_call.1} parent=5 // pred_check
        %p572 = pneg %p571
      $region50: #{tpu_custom_call.1} parent=5 // pred_check_branch
        %574 = sbr.rel (%p572) target = $region52
      $region51: #{tpu_custom_call.1} parent=5 // pred_region
        %s575 = ssub.s32 %s16, 2
        // Predicated region
        $region53: #{tpu_custom_call.1} parent=51 // pred_check
          %p576 = pneg %p165
        $region54: #{tpu_custom_call.1} parent=51 // pred_check_branch
          %578 = sbr.rel (%p576) target = $region56
        $region55: #{tpu_custom_call.1} parent=51 // pred_region
          %s579 = smul.u32 4, %s28
          %p580 = scmp.lt.s32.totalorder %s27, 1
          %s581 = scalar_select %p580, %s27, 1
          %p582 = scmp.lt.s32.totalorder %s579, 7
          %s583 = scalar_select %p582, %s579, 7
          %s584 = smul.addr %s581, 8
          %s585 = sadd.s32 %s583, %s584
          %s586 = smul.addr %s585, 8
          %s587 = scalar_lea.vmem %s4, %s586
        $region56: #{tpu_custom_call.1} parent=51 // pred_fallthru
          _
      $region52: #{tpu_custom_call.1} parent=5 // pred_fallthru
        _
    $region6: #{tpu_custom_call.1} parent=1 // loop_footer
      %s20 = sadd.s32 1, %s16
    $region7: #{tpu_custom_call.1} parent=1 // loop_footer_branch
      %15 = sbr.rel target = $region3
    $region8: #{tpu_custom_call.1} parent=1 // loop_exit
      _
    %588 = vsyncpa [#allocation3], 1
    %s589 = scalar_lea.sflag [#allocation3], 1
    %590 = vsyncpa %s589, 1
    %591 = vsyncpa [#allocation5], 1
    %s592 = scalar_lea.sflag [#allocation5], 1
    %593 = vsyncpa %s592, 1

</llo_original>
